<compile_context>
chip_gen: v6e
topology: v6e:2x2x1
jax: 0.10.0
libtpu: 0.0.40
codegen_flags: <defaults>
</compile_context>

<pallas_src>
import functools

import jax
import jax.numpy as jnp
from jax.experimental import pallas as pl
from jax.experimental.pallas import tpu as pltpu


def _gdn_kernel(x_ref, gamma_ref, beta_ref, o_ref, *, inverse: bool):
    # x_ref / o_ref: (nb, C, thw) tile, native dtype (channels on sublanes,
    #                pixels on lanes).
    # gamma_ref:     (C, C) reparameterized gamma (out_ch, in_ch), resident.
    # beta_ref:      (C, 1) reparameterized beta, f32, resident.
    gamma = gamma_ref[...]
    beta = beta_ref[...]
    for b in range(x_ref.shape[0]):          # static unroll; nb <= 8
        x = x_ref[b]                          # (C, thw), native dtype
        x2 = x * x                            # square in native dtype
        # 1x1 conv over channels == matmul with channels as contraction dim;
        # accumulate in f32 on the MXU regardless of operand dtype.
        norm = jnp.dot(gamma, x2, preferred_element_type=jnp.float32) + beta
        scale = jnp.sqrt(norm) if inverse else jax.lax.rsqrt(norm)
        # Re-read x in native dtype for the epilogue (keeps a single full-tile
        # copy live across the matmul; helps VMEM pressure on v7x).
        o_ref[b] = (x_ref[b] * scale).astype(o_ref.dtype)


def gdn_pallas(x_nchw, gamma_param, beta_param, *, inverse=False,
               beta_bound=1e-06, gamma_bound=0.0, reparam_offset=2 ** (-18),
               target_block_bytes=2 << 20):
    """x_nchw: (N, C, H, W). gamma_param: (C, C). beta_param: (C,)."""
    N, C, H, W = x_nchw.shape
    HW = H * W
    itemsize = jnp.dtype(x_nchw.dtype).itemsize
    pedestal = reparam_offset ** 2
    beta_lb = (beta_bound + pedestal) ** 0.5
    gamma_lb = (gamma_bound + pedestal) ** 0.5

    # Parameter reparameterization (tiny glue): LowerBound + square - pedestal.
    gamma = jnp.maximum(gamma_param, gamma_lb).astype(jnp.float32) ** 2 - pedestal
    beta2d = (jnp.maximum(beta_param, beta_lb).astype(jnp.float32) ** 2
              - pedestal).reshape(C, 1)
    # bf16 models: feed gamma to the MXU in bf16 (one cast here, f32 accumulate
    # inside the kernel).  Everything else stays in the model's native dtype.
    if x_nchw.dtype == jnp.bfloat16:
        gamma = gamma.astype(jnp.bfloat16)

    # Native layout, free reshape: (N, C, H, W) -> (N, C, HW)
    x_flat = x_nchw.reshape(N, C, HW)

    # ---- block sizing from a VMEM byte budget ------------------------------
    target_hw = max(128, (target_block_bytes // max(C * itemsize, 1)) // 128 * 128)
    nb = 1
    if HW <= target_hw:
        thw = HW                               # full pixel extent per block
        if N >= 2:
            # Fold several images per block so each grid step moves a big slab.
            nb_cap = max(1, min(target_block_bytes // max(C * HW * itemsize, 1),
                                N // 2,        # keep >= 2 grid steps (v7x 2 TCs)
                                8))            # static-unroll cap
            for d in range(int(nb_cap), 0, -1):
                if N % d == 0:                 # divisor: no ragged batch blocks
                    nb = d
                    break
        elif HW >= 256:
            # Single image fits one block: split the pixel axis into two
            # lane-dense tiles so both v7x TensorCores get work.
            thw = min(HW, ((HW + 1) // 2 + 127) // 128 * 128)
    else:
        thw = target_hw                        # lane-dense multiple of 128

    grid = (N // nb, pl.cdiv(HW, thw))

    # ---- VMEM limit: double-buffered I/O + f32 intermediates + params ------
    blk = nb * C * thw
    param_bytes = C * C * jnp.dtype(gamma.dtype).itemsize + C * 4
    vmem_limit = int(4 * blk * itemsize        # 2x in + 2x out block buffers
                     + 3 * blk * 4             # x2 / norm / epilogue f32 slabs
                     + 2 * param_bytes
                     + (2 << 20))              # headroom
    vmem_limit = min(max(vmem_limit, 8 << 20), 48 << 20)

    cost = pl.CostEstimate(
        flops=2 * N * HW * C * C + 4 * N * HW * C,
        transcendentals=N * HW * C,
        bytes_accessed=2 * N * C * HW * itemsize + param_bytes,
    )

    kernel = functools.partial(_gdn_kernel, inverse=inverse)
    out_flat = pl.pallas_call(
        kernel,
        out_shape=jax.ShapeDtypeStruct((N, C, HW), x_nchw.dtype),
        grid_spec=pl.GridSpec(
            grid=grid,
            in_specs=[
                pl.BlockSpec((nb, C, thw), lambda n, j: (n, 0, j)),   # x tile
                pl.BlockSpec((C, C), lambda n, j: (0, 0)),            # gamma
                pl.BlockSpec((C, 1), lambda n, j: (0, 0)),            # beta
            ],
            out_specs=pl.BlockSpec((nb, C, thw), lambda n, j: (n, 0, j)),
        ),
        compiler_params=pltpu.CompilerParams(
            dimension_semantics=("parallel", "parallel"),
            vmem_limit_bytes=vmem_limit),
        cost_estimate=cost,
    )(x_flat, gamma, beta2d)

    return out_flat.reshape(N, C, H, W)


def gdn_reference(x_nchw, gamma_param, beta_param, *, inverse=False,
                  beta_bound=1e-06, gamma_bound=0.0, reparam_offset=2 ** (-18)):
    """Pure-JAX reference matching the PyTorch forward."""
    pedestal = reparam_offset ** 2
    beta_lb = (beta_bound + pedestal) ** 0.5
    gamma_lb = (gamma_bound + pedestal) ** 0.5
    gamma = jnp.maximum(gamma_param, gamma_lb) ** 2 - pedestal
    beta = jnp.maximum(beta_param, beta_lb) ** 2 - pedestal
    x2 = x_nchw ** 2
    norm = jnp.einsum("nchw,oc->nohw", x2, gamma) + beta[None, :, None, None]
    norm = jnp.sqrt(norm)
    return x_nchw * norm if inverse else x_nchw / norm


def init_gdn_params(num_features, gamma_init=0.1, reparam_offset=2 ** (-18)):
    """Deterministic parameter init matching GDN.__init__."""
    pedestal = reparam_offset ** 2
    beta = jnp.sqrt(jnp.ones((num_features,), jnp.float32) + pedestal)
    gamma = jnp.sqrt(
        jnp.full((num_features, num_features), gamma_init, jnp.float32)
        * jnp.eye(num_features, dtype=jnp.float32) + pedestal)
    return gamma, beta


# TODO(synk): LowerBound's custom backward (gradient gating) is training-only
# autograd logic; only its forward clamp is needed/implemented here.

if __name__ == "__main__":
    N, C, H, W = 2, 4, 16, 16
    key = jax.random.PRNGKey(0)
    x = jax.random.normal(key, (N, C, H, W), dtype=jnp.float32)
    gamma_param, beta_param = init_gdn_params(C)

    # 1) GDN path (Mode B, nb=1: full HW per block, grid over batch).
    out = jax.block_until_ready(gdn_pallas(x, gamma_param, beta_param, inverse=False))
    ref = gdn_reference(x, gamma_param, beta_param, inverse=False)
    assert out.shape == (N, C, H, W)
    assert jnp.allclose(out, ref, atol=1e-5, rtol=1e-5), "GDN mismatch vs reference"

    # 2) IGDN (inverse) path.
    out_inv = jax.block_until_ready(
        gdn_pallas(x, gamma_param, beta_param, inverse=True))
    ref_inv = gdn_reference(x, gamma_param, beta_param, inverse=True)
    assert jnp.allclose(out_inv, ref_inv, atol=1e-5, rtol=1e-5), "IGDN mismatch"

    # 3) Pixel-tiled path with a ragged last tile (small byte budget forces
    #    128-lane tiles over HW=400).
    x_rag = jax.random.normal(jax.random.PRNGKey(1), (N, C, 20, 20), jnp.float32)
    out_rag = jax.block_until_ready(
        gdn_pallas(x_rag, gamma_param, beta_param, inverse=False,
                   target_block_bytes=2048))
    ref_rag = gdn_reference(x_rag, gamma_param, beta_param, inverse=False)
    assert jnp.allclose(out_rag, ref_rag, atol=1e-5, rtol=1e-5), "ragged-tile mismatch"

    # 4) Batch-fold path: small feature map, several images per block.
    C2 = 8
    gamma2, beta2 = init_gdn_params(C2)
    x_bf = jax.random.normal(jax.random.PRNGKey(2), (8, C2, 8, 8), jnp.float32)
    out_bf = jax.block_until_ready(gdn_pallas(x_bf, gamma2, beta2, inverse=False))
    ref_bf = gdn_reference(x_bf, gamma2, beta2, inverse=False)
    assert jnp.allclose(out_bf, ref_bf, atol=1e-5, rtol=1e-5), "batch-fold mismatch"

    # 5) N == 1, small map: pixel axis split into two tiles (megacore path).
    x_one = jax.random.normal(jax.random.PRNGKey(3), (1, C, 24, 24), jnp.float32)
    out_one = jax.block_until_ready(
        gdn_pallas(x_one, gamma_param, beta_param, inverse=False))
    ref_one = gdn_reference(x_one, gamma_param, beta_param, inverse=False)
    assert jnp.allclose(out_one, ref_one, atol=1e-5, rtol=1e-5), "N=1 split mismatch"

    # 6) bf16 I/O path (native-dtype in/out, bf16 MXU operands, f32 accumulate).
    x_bf16 = jax.random.normal(jax.random.PRNGKey(4), (2, C2, 16, 16),
                               jnp.float32).astype(jnp.bfloat16)
    out_b16 = jax.block_until_ready(gdn_pallas(x_bf16, gamma2, beta2, inverse=False))
    assert out_b16.dtype == jnp.bfloat16
    ref_b16 = gdn_reference(x_bf16.astype(jnp.float32), gamma2, beta2, inverse=False)
    assert jnp.allclose(out_b16.astype(jnp.float32), ref_b16,
                        atol=3e-2, rtol=3e-2), "bf16 mismatch"

    print("KERNEL_OK")
</pallas_src>

<mosaic_0001>
module attributes {stable_mosaic.version = 11 : i64} {
  func.func @_gdn_kernel(%arg0: i32, %arg1: i32, %arg2: memref<1x4x256xf32, #tpu.memory_space<vmem>>, %arg3: memref<4x4xf32, #tpu.memory_space<vmem>>, %arg4: memref<4x1xf32, #tpu.memory_space<vmem>>, %arg5: memref<1x4x256xf32, #tpu.memory_space<vmem>>) attributes {dimension_semantics = [#tpu.dimension_semantics<parallel>, #tpu.dimension_semantics<parallel>], iteration_bounds = array<i64: 2, 1>, scalar_prefetch = 0 : i64, scratch_operands = 0 : i64, tpu.core_type = #tpu.core_type<tc>, window_params = [{transform_indices = @transform_0, window_bounds = array<i64: 1, 4, 256>}, {pipeline_mode = #tpu.pipeline_mode<synchronous>, transform_indices = @transform_1, window_bounds = array<i64: 4, 4>}, {pipeline_mode = #tpu.pipeline_mode<synchronous>, transform_indices = @transform_2, window_bounds = array<i64: 4, 1>}, {transform_indices = @transform_3, window_bounds = array<i64: 1, 4, 256>}]} {
    %c0 = arith.constant 0 : index
    %c0_0 = arith.constant 0 : index
    %0 = vector.load %arg3[%c0, %c0_0] : memref<4x4xf32, #tpu.memory_space<vmem>>, vector<4x4xf32>
    %c0_1 = arith.constant 0 : index
    %c0_2 = arith.constant 0 : index
    %1 = vector.load %arg4[%c0_1, %c0_2] : memref<4x1xf32, #tpu.memory_space<vmem>>, vector<4x1xf32>
    %c0_3 = arith.constant 0 : index
    %c0_4 = arith.constant 0 : index
    %c0_5 = arith.constant 0 : index
    %2 = vector.load %arg2[%c0_3, %c0_4, %c0_5] : memref<1x4x256xf32, #tpu.memory_space<vmem>>, vector<1x4x256xf32>
    %3 = vector.shape_cast %2 : vector<1x4x256xf32> to vector<4x256xf32>
    %4 = arith.mulf %3, %3 : vector<4x256xf32>
    %cst = arith.constant dense<0.000000e+00> : vector<4x256xf32>
    %5 = tpu.matmul %0, %4, %cst {dimension_numbers = #tpu.dot_dimension_numbers<[1], [0], [0], [1], [0, 0, 1, 1], [], []>} : vector<4x4xf32>, vector<4x256xf32>, vector<4x256xf32> -> vector<4x256xf32>
    %6 = vector.broadcast %1 : vector<4x1xf32> to vector<4x256xf32>
    %7 = arith.addf %5, %6 : vector<4x256xf32>
    %8 = math.rsqrt %7 : vector<4x256xf32>
    %c0_6 = arith.constant 0 : index
    %c0_7 = arith.constant 0 : index
    %c0_8 = arith.constant 0 : index
    %9 = vector.load %arg2[%c0_6, %c0_7, %c0_8] : memref<1x4x256xf32, #tpu.memory_space<vmem>>, vector<1x4x256xf32>
    %10 = vector.shape_cast %9 : vector<1x4x256xf32> to vector<4x256xf32>
    %11 = arith.mulf %10, %8 : vector<4x256xf32>
    %c0_9 = arith.constant 0 : index
    %c0_10 = arith.constant 0 : index
    %c0_11 = arith.constant 0 : index
    %12 = vector.load %arg5[%c0_9, %c0_10, %c0_11] : memref<1x4x256xf32, #tpu.memory_space<vmem>>, vector<1x4x256xf32>
    %13 = vector.shape_cast %12 : vector<1x4x256xf32> to vector<4x256xf32>
    %14 = vector.shape_cast %11 : vector<4x256xf32> to vector<1x4x256xf32>
    tpu.vector_store %arg5[%c0_9, %c0_10, %c0_11], %14 {strides = array<i32>} : memref<1x4x256xf32, #tpu.memory_space<vmem>>, vector<1x4x256xf32>,
    return
  }
  func.func @transform_0(%arg0: i32, %arg1: i32) -> (i32, i32, i32) {
    %c0_i32 = arith.constant 0 : i32
    %c0_i32_0 = arith.constant 0 : i32
    return %arg0, %c0_i32, %arg1 : i32, i32, i32
  }
  func.func @transform_1(%arg0: i32, %arg1: i32) -> (i32, i32) {
    %c0_i32 = arith.constant 0 : i32
    %c0_i32_0 = arith.constant 0 : i32
    %c0_i32_1 = arith.constant 0 : i32
    return %c0_i32, %c0_i32_0 : i32, i32
  }
  func.func @transform_2(%arg0: i32, %arg1: i32) -> (i32, i32) {
    %c0_i32 = arith.constant 0 : i32
    %c0_i32_0 = arith.constant 0 : i32
    %c0_i32_1 = arith.constant 0 : i32
    return %c0_i32, %c0_i32_0 : i32, i32
  }
  func.func @transform_3(%arg0: i32, %arg1: i32) -> (i32, i32, i32) {
    %c0_i32 = arith.constant 0 : i32
    %c0_i32_0 = arith.constant 0 : i32
    return %arg0, %c0_i32, %arg1 : i32, i32, i32
  }
}

</mosaic_0001>

<llo_original>
// kernel: tpu_custom_call.1
$region0: #{tpu_custom_call.1}
  #allocation0 [shape = 'u32[]', space=smem, size = 0x4, offset = 0x4, fixed_abs, tag = 'smem constant byte address 0x4 - core index']
  #allocation1 [shape = 'u32[144,128]{1,0:T(1,128)}', space=vmem, size = 0x12000, scoped, tag = 'internal scratch']
  %s0 = inlined_call_operand.hbm [shape: f32[2,4,256], index: 0, kind: input, shape index: {}]
  %s1 = inlined_call_operand.vmem [shape: f32[4,4], index: 1, kind: input, shape index: {}]
  %s2 = inlined_call_operand.vmem [shape: f32[4,1], index: 2, kind: input, shape index: {}]
  %s3 = inlined_call_operand.hbm [shape: f32[2,4,256], index: 3, kind: output, shape index: {}]
  %s4 = sld [smem:[#allocation0]]
  $region49: #{tpu_custom_call.1} parent=0
    _
  %s6 = ssub.s32 1, %s4
  %s7 = scalar_select 0, %s6, %s4
  $region1: #{tpu_custom_call.1} parent=0
    #allocation2 [shape = 'u8[8192]{0}', space=vmem, size = 0x2000, scoped, tag = 'input window, operand 0']
    #allocation3 [shape = 's32[2]{0}', space=sflag, size = 0x8, scoped, tag = 'scoped memory for tpu_custom_call.1']
    #allocation4 [shape = 's32[2]{0}', space=sflag, size = 0x8, scoped, tag = 'scoped memory for tpu_custom_call.1']
    #allocation5 [shape = 'u8[8192]{0}', space=vmem, size = 0x2000, scoped, tag = 'output window, operand 0']
    %8 = vsyncpa [#allocation3], 0
    %s9 = scalar_lea.sflag [#allocation3], 1
    %10 = vsyncpa %s9, 0
    %11 = vsyncpa [#allocation4], 0
    %s12 = scalar_lea.sflag [#allocation4], 1
    %13 = vsyncpa %s12, 0
    loop: start=0, step=1, limit=4
    $region2: #{tpu_custom_call.1} parent=1 // loop_pre_header
      _
    $region3: #{tpu_custom_call.1} parent=1 // loop_header
      %s15 = sphi 0, %s19
      %p16 = scmp.ge.s32.totalorder %s15, 4
      %s22 = sphi 0, %s34
      %s23 = sphi 0, %s30
      %s24 = sphi 0, %s22
      %s25 = sphi 0, %s23
      %s26 = sphi 0, %s24
      %s27 = sphi 0, %s25
      %s39 = sphi 0, %s41
      %s42 = sphi 0, %s39
      %s43 = sphi 0, %s42
      %s59 = sphi 0, %s43
      %s63 = sphi 0, %s63
      %s65 = sphi 0, %s63
      %s66 = sphi 0, %s65
      %s80 = sphi 0, %s66
      %s84 = sphi 0, %s84
      %s86 = sphi 0, %s84
      %s87 = sphi 0, %s86
      %s101 = sphi 0, %s87
      %s109 = sphi 0, %s111
      %s112 = sphi 0, %s109
      %s113 = sphi 0, %s112
      %s129 = sphi 0, %s113
    $region4: #{tpu_custom_call.1} parent=1 // loop_header_branch
      %18 = sbr.rel (%p16) target = $region8
    $region5: #{tpu_custom_call.1} parent=1 // loop_body
      %s20 = ssub.s32 %s15, 1
      %s21 = ssub.s32 %s15, 2
      %s28 = sadd.s32 1, %s23
      %p29 = scmp.ge.s32.totalorder %s28, 1
      %s30 = scalar_select %p29, 0, %s28
      %s31 = sadd.s32 1, %s22
      %s32 = scalar_select %p29, %s31, %s22
      %p33 = scmp.ge.s32.totalorder %s32, 2
      %s34 = scalar_select %p33, 0, %s32
      %s35 = ssub.s32 %s22, %s34
      %s36 = ssub.s32 %s23, %s30
      %s37 = sor.u32 %s35, %s36
      %p38 = scmp.eq.s32.totalorder %s37, 0
      %s40 = sadd.s32 %s39, 1
      %s41 = scalar_select %p38, %s39, %s40
      %p44 = pneg %p38
      %p45 = scmp.eq.s32.totalorder %s15, 1
      %p46 = por %p44, %p45
      %p47 = scmp.ne.s32.totalorder %s39, %s42
      %p48 = scmp.eq.s32.totalorder %s15, 0
      %p49 = por %p47, %p48
      %p50 = scmp.ne.s32.totalorder %s39, %s42
      %p51 = scmp.eq.s32.totalorder %s20, 1
      %p52 = por %p50, %p51
      %p53 = scmp.ne.s32.totalorder %s42, %s43
      %p54 = scmp.eq.s32.totalorder %s20, 0
      %p55 = por %p53, %p54
      %p56 = scmp.ne.s32.totalorder %s42, %s43
      %p57 = scmp.eq.s32.totalorder %s21, 1
      %p58 = por %p56, %p57
      %p60 = scmp.ne.s32.totalorder %s43, %s59
      %p61 = scmp.eq.s32.totalorder %s21, 0
      %p62 = por %p60, %p61
      %s64 = sadd.s32 %s63, 1
      %p67 = scmp.eq.s32.totalorder %s15, 1
      %p68 = scmp.ne.s32.totalorder %s63, %s65
      %p69 = scmp.eq.s32.totalorder %s15, 0
      %p70 = por %p68, %p69
      %p71 = scmp.ne.s32.totalorder %s63, %s65
      %p72 = scmp.eq.s32.totalorder %s20, 1
      %p73 = por %p71, %p72
      %p74 = scmp.ne.s32.totalorder %s65, %s66
      %p75 = scmp.eq.s32.totalorder %s20, 0
      %p76 = por %p74, %p75
      %p77 = scmp.ne.s32.totalorder %s65, %s66
      %p78 = scmp.eq.s32.totalorder %s21, 1
      %p79 = por %p77, %p78
      %p81 = scmp.ne.s32.totalorder %s66, %s80
      %p82 = scmp.eq.s32.totalorder %s21, 0
      %p83 = por %p81, %p82
      %s85 = sadd.s32 %s84, 1
      %p88 = scmp.eq.s32.totalorder %s15, 1
      %p89 = scmp.ne.s32.totalorder %s84, %s86
      %p90 = scmp.eq.s32.totalorder %s15, 0
      %p91 = por %p89, %p90
      %p92 = scmp.ne.s32.totalorder %s84, %s86
      %p93 = scmp.eq.s32.totalorder %s20, 1
      %p94 = por %p92, %p93
      %p95 = scmp.ne.s32.totalorder %s86, %s87
      %p96 = scmp.eq.s32.totalorder %s20, 0
      %p97 = por %p95, %p96
      %p98 = scmp.ne.s32.totalorder %s86, %s87
      %p99 = scmp.eq.s32.totalorder %s21, 1
      %p100 = por %p98, %p99
      %p102 = scmp.ne.s32.totalorder %s87, %s101
      %p103 = scmp.eq.s32.totalorder %s21, 0
      %p104 = por %p102, %p103
      %s105 = ssub.s32 %s22, %s34
      %s106 = ssub.s32 %s23, %s30
      %s107 = sor.u32 %s105, %s106
      %p108 = scmp.eq.s32.totalorder %s107, 0
      %s110 = sadd.s32 %s109, 1
      %s111 = scalar_select %p108, %s109, %s110
      %p114 = pneg %p108
      %p115 = scmp.eq.s32.totalorder %s15, 1
      %p116 = por %p114, %p115
      %p117 = scmp.ne.s32.totalorder %s109, %s112
      %p118 = scmp.eq.s32.totalorder %s15, 0
      %p119 = por %p117, %p118
      %p120 = scmp.ne.s32.totalorder %s109, %s112
      %p121 = scmp.eq.s32.totalorder %s20, 1
      %p122 = por %p120, %p121
      %p123 = scmp.ne.s32.totalorder %s112, %s113
      %p124 = scmp.eq.s32.totalorder %s20, 0
      %p125 = por %p123, %p124
      %p126 = scmp.ne.s32.totalorder %s112, %s113
      %p127 = scmp.eq.s32.totalorder %s21, 1
      %p128 = por %p126, %p127
      %p130 = scmp.ne.s32.totalorder %s113, %s129
      %p131 = scmp.eq.s32.totalorder %s21, 0
      %p132 = por %p130, %p131
      %p133 = scmp.le.s32.totalorder 1, %s15
      %p134 = scmp.lt.s32.totalorder %s15, 3
      %p135 = pnand %p133, %p134
      %p136 = pneg %p135
      // Predicated region
      $region9: #{tpu_custom_call.1} parent=5 // pred_check
        _
      $region10: #{tpu_custom_call.1} parent=5 // pred_check_branch
        %138 = sbr.rel (%p135) target = $region12
      $region11: #{tpu_custom_call.1} parent=5 // pred_region
        %s139 = ssub.s32 %s15, 1
        // Predicated region
        $region13: #{tpu_custom_call.1} parent=11 // pred_check
          %p140 = pneg %p76
        $region14: #{tpu_custom_call.1} parent=11 // pred_check_branch
          %142 = sbr.rel (%p140) target = $region16
        $region15: #{tpu_custom_call.1} parent=11 // pred_region
          _
        $region16: #{tpu_custom_call.1} parent=11 // pred_fallthru
          _
        // Predicated region
        $region17: #{tpu_custom_call.1} parent=11 // pred_check
          %p143 = pneg %p97
        $region18: #{tpu_custom_call.1} parent=11 // pred_check_branch
          %145 = sbr.rel (%p143) target = $region20
        $region19: #{tpu_custom_call.1} parent=11 // pred_region
          _
        $region20: #{tpu_custom_call.1} parent=11 // pred_fallthru
          _
      $region12: #{tpu_custom_call.1} parent=5 // pred_fallthru
        _
      %p146 = scmp.lt.s32.totalorder %s15, 2
      // Predicated region
      $region21: #{tpu_custom_call.1} parent=5 // pred_check
        %p147 = pneg %p146
      $region22: #{tpu_custom_call.1} parent=5 // pred_check_branch
        %149 = sbr.rel (%p147) target = $region24
      $region23: #{tpu_custom_call.1} parent=5 // pred_region
        // Predicated region
        $region25: #{tpu_custom_call.1} parent=23 // pred_check
          %p150 = pneg %p49
        $region26: #{tpu_custom_call.1} parent=23 // pred_check_branch
          %152 = sbr.rel (%p150) target = $region28
        $region27: #{tpu_custom_call.1} parent=23 // pred_region
          %s153 = sand.u32 %s39, 1
          %s154 = scalar_lea.sflag [#allocation3], %s153
          %s155 = sand.u32 %s39, 1
          %s156 = smul.addr %s155, 8
          %s157 = scalar_lea.vmem [#allocation2], %s156
          %s158 = smul.u32 2, %s23
          %s160 = ssub.s32 128, 128
          %161 = vsyncadd %s154, %s160
          %s162 = smul.addr %s22, 2
          %s163 = sadd.s32 %s158, %s162
          %s164 = smul.addr %s163, 64
          %s165 = scalar_lea.hbm %s0, %s164
          %s167 = sshll.u32 %s157, 4
          %s168 = int_to_ptr.vmem [resolvable:$true] %s167
          %170 = dma.hbm_to_vmem [thread:$0]  %s165, 128, %s168, %s154
        $region28: #{tpu_custom_call.1} parent=23 // pred_fallthru
          _
      $region24: #{tpu_custom_call.1} parent=5 // pred_fallthru
        _
      %p171 = scmp.le.s32.totalorder 1, %s15
      %p172 = scmp.lt.s32.totalorder %s15, 3
      %p173 = pnand %p171, %p172
      %p174 = pneg %p173
      // Predicated region
      $region29: #{tpu_custom_call.1} parent=5 // pred_check
        _
      $region30: #{tpu_custom_call.1} parent=5 // pred_check_branch
        %176 = sbr.rel (%p173) target = $region32
      $region31: #{tpu_custom_call.1} parent=5 // pred_region
        %s177 = ssub.s32 %s15, 1
        %s178 = sand.u32 %s42, 1
        %s179 = scalar_lea.sflag [#allocation3], %s178
        %s180 = sand.u32 %s42, 1
        %s181 = smul.addr %s180, 8
        %s182 = scalar_lea.vmem [#allocation2], %s181
        // Predicated region
        $region33: #{tpu_custom_call.1} parent=31 // pred_check
          %p183 = pneg %p55
        $region34: #{tpu_custom_call.1} parent=31 // pred_check_branch
          %185 = sbr.rel (%p183) target = $region36
        $region35: #{tpu_custom_call.1} parent=31 // pred_region
          %186 = dma.done %s179, 128
        $region36: #{tpu_custom_call.1} parent=31 // pred_fallthru
          _
        %s187 = sand.u32 %s42, 1
        %s188 = scalar_lea.sflag [#allocation3], %s187
        %s189 = sand.u32 %s42, 1
        %s190 = smul.addr %s189, 8
        %s191 = scalar_lea.vmem [#allocation2], %s190
        %p192 = pneg %p55
        %p193 = pneg %p52
        %p194 = pneg %p76
        %p195 = pneg %p73
        %p196 = pneg %p97
        %p197 = pneg %p94
        %p198 = pneg %p125
        %p199 = pneg %p122
        %s200 = sand.u32 %s112, 1
        %s201 = scalar_lea.sflag [#allocation4], %s200
        %s202 = sand.u32 %s112, 1
        %s203 = smul.addr %s202, 8
        %s204 = scalar_lea.vmem [#allocation5], %s203
        %s205 = smul.u32 2, %s25
        %s206 = smul.u32 2, %s25
        %v207 = vld [vmem:[%s1] sm:$0xf]
        %v208 = vld [vmem:[%s2] sm:$0xf]
        %v209 = vld [vmem:[%s182] sm:$0xff]
        %v210 = vmul.f32 %v209, %v209
        %212 = vset.pattern.permute.xlu0 0
        %213 = vperm.xlu0 %212, %v208
        %v214 = vpop.permute.xlu0 %213
        %v217 = vcombine.high %v210, %v210
        %vm218 = vcmask 31744
        %v220 = vsel %vm218, %v207, 0
        %vm222 = vcmask 1043456
        %v223 = vsel %vm222, %v210, 0
        %v225 = vsel %vm222, %v217, 0
        %227 = vmatprep.subr.mxu0 0.0
        %228 = vmatpush1.msra.mxu0 0.0
        %229 = vmatprep.subr.mxu0 0.0
        %230 = vmatpush1.msra.mxu0 0.0
        %231 = vmatprep.subr.mxu0 0.0
        %232 = vmatpush1.msra.mxu0 0.0
        %233 = vmatprep.subr.mxu0 0.0
        %234 = vmatpush1.msra.mxu0 0.0
        %235 = vmatprep.subr.mxu0 0.0
        %236 = vmatpush1.msra.mxu0 0.0
        %237 = vmatprep.subr.mxu0 0.0
        %238 = vmatpush1.msra.mxu0 0.0
        %239 = vmatprep.subr.mxu0 0.0
        %240 = vmatpush1.msra.mxu0 0.0
        %241 = vmatprep.subr.mxu0 0.0
        %242 = vmatpush1.msra.mxu0 0.0
        %243 = vmatprep.subr.mxu0 0.0
        %244 = vmatpush1.msra.mxu0 0.0
        %245 = vmatprep.subr.mxu0 0.0
        %246 = vmatpush1.msra.mxu0 0.0
        %247 = vmatprep.subr.mxu0 0.0
        %248 = vmatpush1.msra.mxu0 0.0
        %249 = vmatprep.subr.mxu0 0.0
        %250 = vmatpush1.msra.mxu0 0.0
        %251 = vmatprep.subr.mxu0 0.0
        %252 = vmatpush1.msra.mxu0 0.0
        %253 = vmatprep.subr.mxu0 0.0
        %254 = vmatpush1.msra.mxu0 0.0
        %255 = vmatprep.subr.mxu0 0.0
        %256 = vmatpush1.msra.mxu0 0.0
        %257 = vmatprep.subr.mxu0 %v225
        %258 = vmatpush1.msra.mxu0 %v223
        %259 = vmatprep.subr.mxu0 0.0
        %260 = vmatpush2.msra.mxu0 0.0
        %261 = vmatprep.subr.mxu0 0.0
        %262 = vmatpush2.msra.mxu0 0.0
        %263 = vmatprep.subr.mxu0 0.0
        %264 = vmatpush2.msra.mxu0 0.0
        %265 = vmatprep.subr.mxu0 0.0
        %266 = vmatpush2.msra.mxu0 0.0
        %267 = vmatprep.subr.mxu0 0.0
        %268 = vmatpush2.msra.mxu0 0.0
        %269 = vmatprep.subr.mxu0 0.0
        %270 = vmatpush2.msra.mxu0 0.0
        %271 = vmatprep.subr.mxu0 0.0
        %272 = vmatpush2.msra.mxu0 0.0
        %273 = vmatprep.subr.mxu0 0.0
        %274 = vmatpush2.msra.mxu0 0.0
        %275 = vmatprep.subr.mxu0 0.0
        %276 = vmatpush2.msra.mxu0 0.0
        %277 = vmatprep.subr.mxu0 0.0
        %278 = vmatpush2.msra.mxu0 0.0
        %279 = vmatprep.subr.mxu0 0.0
        %280 = vmatpush2.msra.mxu0 0.0
        %281 = vmatprep.subr.mxu0 0.0
        %282 = vmatpush2.msra.mxu0 0.0
        %283 = vmatprep.subr.mxu0 0.0
        %284 = vmatpush2.msra.mxu0 0.0
        %285 = vmatprep.subr.mxu0 0.0
        %286 = vmatpush2.msra.mxu0 0.0
        %287 = vmatprep.subr.mxu0 0.0
        %288 = vmatpush2.msra.mxu0 0.0
        %289 = vmatprep.subr.mxu0 0.0
        %290 = vmatpush2.msra.mxu0 0.0
        %291 = vmatprep.mubr.f32.mxu0 0.0
        %292 = vmatmul.mubr.f32.gmra.mxu0 %v220
        %v293 = vpop.f32.mrf.mxu0
        %v294 = vadd.f32 %v214, %v293
        %v295 = vpop.f32.mrf.mxu0
        %v296 = vadd.f32 %v214, %v295
        %297 = vdwg.mxu0
        %v298 = vrsqrt.pop %v294
        %v299 = vrsqrt.pop %v296
        %v302 = vcombine.low %v298, %v299
        %v304 = vmul.f32 %v209, %v302
        %305 = vst [vmem:[%s204] sm:$0xff] %v304
        %s306 = sand.u32 %s112, 1
        %s307 = scalar_lea.sflag [#allocation4], %s306
        %s308 = sand.u32 %s112, 1
        %s309 = smul.addr %s308, 8
        %s310 = scalar_lea.vmem [#allocation5], %s309
        // Predicated region
        $region37: #{tpu_custom_call.1} parent=31 // pred_check
          %p311 = pneg %p122
        $region38: #{tpu_custom_call.1} parent=31 // pred_check_branch
          %313 = sbr.rel (%p311) target = $region40
        $region39: #{tpu_custom_call.1} parent=31 // pred_region
          %s314 = smul.u32 2, %s25
          %s316 = ssub.s32 128, 128
          %317 = vsyncadd %s307, %s316
          %s318 = smul.addr %s24, 2
          %s319 = sadd.s32 %s314, %s318
          %s320 = smul.addr %s319, 64
          %s321 = scalar_lea.hbm %s3, %s320
          %s323 = sshll.u32 %s310, 4
          %s324 = int_to_ptr.vmem [resolvable:$true] %s323
          %326 = dma.vmem_to_hbm [thread:$0]  %s324, 128, %s321, %s307
        $region40: #{tpu_custom_call.1} parent=31 // pred_fallthru
          _
      $region32: #{tpu_custom_call.1} parent=5 // pred_fallthru
        _
      %p327 = scmp.le.s32.totalorder 2, %s15
      // Predicated region
      $region41: #{tpu_custom_call.1} parent=5 // pred_check
        %p328 = pneg %p327
      $region42: #{tpu_custom_call.1} parent=5 // pred_check_branch
        %330 = sbr.rel (%p328) target = $region44
      $region43: #{tpu_custom_call.1} parent=5 // pred_region
        %s331 = ssub.s32 %s15, 2
        // Predicated region
        $region45: #{tpu_custom_call.1} parent=43 // pred_check
          %p332 = pneg %p128
        $region46: #{tpu_custom_call.1} parent=43 // pred_check_branch
          %334 = sbr.rel (%p332) target = $region48
        $region47: #{tpu_custom_call.1} parent=43 // pred_region
          %s335 = sand.u32 %s113, 1
          %s336 = scalar_lea.sflag [#allocation4], %s335
          %s337 = sand.u32 %s113, 1
          %s338 = smul.addr %s337, 8
          %s339 = scalar_lea.vmem [#allocation5], %s338
          %340 = dma.done %s336, 128
        $region48: #{tpu_custom_call.1} parent=43 // pred_fallthru
          _
      $region44: #{tpu_custom_call.1} parent=5 // pred_fallthru
        _
    $region6: #{tpu_custom_call.1} parent=1 // loop_footer
      %s19 = sadd.s32 1, %s15
    $region7: #{tpu_custom_call.1} parent=1 // loop_footer_branch
      %14 = sbr.rel target = $region3
    $region8: #{tpu_custom_call.1} parent=1 // loop_exit
      _
    %341 = vsyncpa [#allocation3], 1
    %s342 = scalar_lea.sflag [#allocation3], 1
    %343 = vsyncpa %s342, 1
    %344 = vsyncpa [#allocation4], 1
    %s345 = scalar_lea.sflag [#allocation4], 1
    %346 = vsyncpa %s345, 1

</llo_original>
